<compile_context>
chip_gen: v7x
topology: tpu7x:2x2x1
jax: 0.10.0
libtpu: 0.0.40
codegen_flags: <defaults>
</compile_context>

<pallas_src>
import functools

import jax
import jax.numpy as jnp
from jax.experimental import pallas as pl
from jax.experimental.pallas import tpu as pltpu


def _rmsnorm_kernel(x_ref, w_ref, o_ref, *, eps, hidden):
    # x_ref: (tile_rows, Hp); w_ref: (1, Hp) f32, already zero-centered-adjusted.
    x = x_ref[...].astype(jnp.float32)
    norm_x2 = jnp.sum(x * x, axis=-1, keepdims=True)   # padded lanes are exactly 0
    rms_x2 = norm_x2 / hidden + eps                    # true in_features (Torch semantics)
    r_rms_x = jax.lax.rsqrt(rms_x2)                    # EUP rsqrt, f32
    o_ref[...] = (w_ref[...] * (x * r_rms_x)).astype(o_ref.dtype)


def _round16_down(n):
    return max(16, (n // 16) * 16)


def _vmem_capacity_bytes():
    try:
        return int(pltpu.get_tpu_info().vmem_capacity_bytes)
    except Exception:
        return 64 << 20   # conservative fallback (v7x per-TC size)


def _choose_tile_rows(rows, hidden, itemsize, vmem_capacity):
    """Pick a large, vreg-aligned row tile that amortizes per-step overhead while
    (a) staying inside a generation-aware live-VMEM budget and (b) never
    collapsing the grid to a single step when the row count permits."""
    # ~6 MiB input block target.
    target_block_bytes = 6 << 20
    t = max(16, target_block_bytes // max(1, hidden * itemsize))
    t = (t // 16) * 16                                  # multiple of 16 (bf16 packing)

    # Live VMEM per row: 2x in + 2x out double buffers + ~12 B/elem f32 temps
    # (x upcast + pre-downcast f32 result).
    if vmem_capacity >= (100 << 20):                    # v5e / v6e (128 MiB VMEM)
        vmem_budget = 80 << 20
    else:                                               # v7x (64 MiB / TC)
        vmem_budget = 38 << 20
    per_row = hidden * (4 * itemsize + 12)
    max_t = max(16, ((vmem_budget // per_row) // 16) * 16)
    t = min(t, max_t)

    # Never emit a 1-step grid when avoidable: >=4 steps keeps the DMA pipeline
    # full; >=2 steps lets v7x shard the parallel axis across both TensorCores.
    if rows > 64:
        t = min(t, _round16_down(pl.cdiv(rows, 4)))
    elif rows > 16:
        t = min(t, _round16_down(pl.cdiv(rows, 2)))

    return max(1, min(t, rows))


def rmsnorm_pallas(x, weight, *, eps=1e-5, zero_centered_gamma=False,
                   tile_rows=None):
    """RMSNorm forward matching TorchRMSNorm.forward semantics.

    x: (..., H) any float dtype; weight: (H,). Output dtype == x.dtype.
    """
    orig_shape = x.shape
    H = orig_shape[-1]
    rows = 1
    for s in orig_shape[:-1]:
        rows *= s
    x2d = x.reshape(rows, H)

    # Hoist weight prep out of the kernel: f32 cast + zero-centered shift.
    w_f32 = weight.astype(jnp.float32)
    if zero_centered_gamma:
        w_f32 = 1.0 + w_f32

    # Lane-density guard: pad the hidden axis to a multiple of 128 so stores are
    # unmasked full-lane vst's.  Zero padding does not perturb the sum of squares
    # and the true H is used as the denominator.
    Hp = ((H + 127) // 128) * 128 if H > 128 or H % 128 != 0 else H
    Hp = max(Hp, 128) if H % 128 != 0 else H
    if Hp != H:
        x2d = jnp.pad(x2d, ((0, 0), (0, Hp - H)))
        w_f32 = jnp.pad(w_f32, ((0, Hp - H),))
    w2d = w_f32.reshape(1, Hp)

    itemsize = jnp.dtype(x.dtype).itemsize
    vmem_capacity = _vmem_capacity_bytes()
    if tile_rows is None:
        tile_rows = _choose_tile_rows(rows, Hp, itemsize, vmem_capacity)
    tile_rows = max(1, min(tile_rows, rows))

    # cdiv grid: partial last block is fine (per-row reduction, masked writeback).
    grid = (pl.cdiv(rows, tile_rows),)

    # Scoped VMEM: double-buffered in+out tiles + f32 intermediates + weight,
    # with 25% headroom, capped at ~75% of physical VMEM.
    tile_elems = tile_rows * Hp
    needed = tile_elems * (4 * itemsize + 12) + Hp * 8
    ceiling = min((vmem_capacity * 3) // 4, 96 << 20)
    vmem_limit = int(min(max(needed * 5 // 4, 16 << 20), ceiling))

    kernel = functools.partial(_rmsnorm_kernel, eps=eps, hidden=H)

    # Advisory cost hint: HBM-bound (read x + write out), rsqrt per row.
    cost = pl.CostEstimate(
        flops=int(4 * rows * Hp),
        transcendentals=int(rows),
        bytes_accessed=int(2 * rows * Hp * itemsize + Hp * 4),
    )

    out2d = pl.pallas_call(
        kernel,
        out_shape=jax.ShapeDtypeStruct((rows, Hp), x.dtype),
        grid_spec=pltpu.PrefetchScalarGridSpec(
            num_scalar_prefetch=0,
            grid=grid,
            in_specs=[
                pl.BlockSpec((tile_rows, Hp), lambda i: (i, 0)),
                pl.BlockSpec((1, Hp), lambda i: (0, 0)),   # weight stays resident
            ],
            out_specs=pl.BlockSpec((tile_rows, Hp), lambda i: (i, 0)),
        ),
        compiler_params=pltpu.CompilerParams(
            dimension_semantics=("parallel",),
            vmem_limit_bytes=vmem_limit,
        ),
        cost_estimate=cost,
    )(x2d, w2d)

    if Hp != H:
        out2d = out2d[:, :H]
    return out2d.reshape(orig_shape)


def rmsnorm_ref(x, weight, *, eps=1e-5, zero_centered_gamma=False):
    xf = x.astype(jnp.float32)
    norm_x2 = jnp.sum(xf * xf, axis=-1, keepdims=True)
    rms_x2 = norm_x2 / x.shape[-1] + eps
    r_rms_x = rms_x2 ** (-0.5)
    x_normed = xf * r_rms_x
    w = weight.astype(jnp.float32)
    if zero_centered_gamma:
        w = 1.0 + w
    return (w * x_normed).astype(x.dtype)


if __name__ == "__main__":
    key = jax.random.PRNGKey(0)

    # --- Test 1: module-sized demo (batch=2, seq=8, hidden=32), bf16,
    #     zero_centered_gamma=True.  Exercises the lane-padding path (H=32->128).
    batch, seq, hidden = 2, 8, 32
    eps = 1e-5
    k1, k2, k3, k4 = jax.random.split(key, 4)
    x = jax.random.normal(k1, (batch, seq, hidden), dtype=jnp.float32).astype(
        jnp.bfloat16
    )
    weight = (0.1 * jax.random.normal(k2, (hidden,), dtype=jnp.float32)).astype(
        jnp.bfloat16
    )
    out = rmsnorm_pallas(x, weight, eps=eps, zero_centered_gamma=True)
    jax.block_until_ready(out)
    ref = rmsnorm_ref(x, weight, eps=eps, zero_centered_gamma=True)
    assert out.shape == x.shape and out.dtype == x.dtype
    err = jnp.max(jnp.abs(out.astype(jnp.float32) - ref.astype(jnp.float32)))
    assert float(err) < 1e-2, f"test1 max abs err {float(err)}"

    # --- Test 2: cdiv / partial-last-block + multi-step grid path
    #     (rows=40, H=128, forced tile_rows=16 -> grid of 3 with a ragged tail).
    x2 = jax.random.normal(k3, (5, 8, 128), dtype=jnp.float32)
    w2 = 0.1 * jax.random.normal(k4, (128,), dtype=jnp.float32)
    out2 = rmsnorm_pallas(x2, w2, eps=eps, zero_centered_gamma=False, tile_rows=16)
    jax.block_until_ready(out2)
    ref2 = rmsnorm_ref(x2, w2, eps=eps, zero_centered_gamma=False)
    err2 = jnp.max(jnp.abs(out2 - ref2))
    assert float(err2) < 1e-5, f"test2 max abs err {float(err2)}"

    # --- Test 3: auto tile selection with rows large enough to require a
    #     multi-step grid (rows=256, H=256), f32.
    x3 = jax.random.normal(k3, (2, 128, 256), dtype=jnp.float32)
    w3 = 0.05 * jax.random.normal(k4, (256,), dtype=jnp.float32)
    out3 = rmsnorm_pallas(x3, w3, eps=eps, zero_centered_gamma=True)
    jax.block_until_ready(out3)
    ref3 = rmsnorm_ref(x3, w3, eps=eps, zero_centered_gamma=True)
    err3 = jnp.max(jnp.abs(out3 - ref3))
    assert float(err3) < 1e-5, f"test3 max abs err {float(err3)}"

    print("KERNEL_OK")
</pallas_src>

<mosaic_0001>
module attributes {stable_mosaic.version = 11 : i64} {
  func.func @_rmsnorm_kernel(%arg0: i32, %arg1: memref<16x128xbf16, #tpu.memory_space<vmem>>, %arg2: memref<1x128xf32, #tpu.memory_space<vmem>>, %arg3: memref<16x128xbf16, #tpu.memory_space<vmem>>) attributes {dimension_semantics = [#tpu.dimension_semantics<parallel>], iteration_bounds = array<i64: 1>, scalar_prefetch = 0 : i64, scratch_operands = 0 : i64, tpu.core_type = #tpu.core_type<tc>, window_params = [{transform_indices = @transform_0, window_bounds = array<i64: 16, 128>}, {pipeline_mode = #tpu.pipeline_mode<synchronous>, transform_indices = @transform_1, window_bounds = array<i64: 1, 128>}, {transform_indices = @transform_2, window_bounds = array<i64: 16, 128>}]} {
    %c0 = arith.constant 0 : index
    %c0_0 = arith.constant 0 : index
    %0 = vector.load %arg1[%c0, %c0_0] : memref<16x128xbf16, #tpu.memory_space<vmem>>, vector<16x128xbf16>
    %1 = arith.extf %0 : vector<16x128xbf16> to vector<16x128xf32>
    %2 = arith.mulf %1, %1 : vector<16x128xf32>
    %cst = arith.constant dense<0.000000e+00> : vector<16xf32>
    %3 = vector.multi_reduction <add>, %2, %cst [1] : vector<16x128xf32> to vector<16xf32>
    %4 = vector.shape_cast %3 : vector<16xf32> to vector<16x1xf32>
    %cst_1 = arith.constant 3.200000e+01 : f32
    %5 = vector.broadcast %cst_1 : f32 to vector<16x1xf32>
    %6 = arith.divf %4, %5 : vector<16x1xf32>
    %cst_2 = arith.constant 9.99999974E-6 : f32
    %7 = vector.broadcast %cst_2 : f32 to vector<16x1xf32>
    %8 = arith.addf %6, %7 : vector<16x1xf32>
    %9 = math.rsqrt %8 : vector<16x1xf32>
    %c0_3 = arith.constant 0 : index
    %c0_4 = arith.constant 0 : index
    %10 = vector.load %arg2[%c0_3, %c0_4] : memref<1x128xf32, #tpu.memory_space<vmem>>, vector<1x128xf32>
    %11 = vector.broadcast %9 : vector<16x1xf32> to vector<16x128xf32>
    %12 = arith.mulf %1, %11 : vector<16x128xf32>
    %13 = vector.broadcast %10 : vector<1x128xf32> to vector<16x128xf32>
    %14 = arith.mulf %13, %12 : vector<16x128xf32>
    %15 = arith.truncf %14 : vector<16x128xf32> to vector<16x128xbf16>
    %c0_5 = arith.constant 0 : index
    %c0_6 = arith.constant 0 : index
    %16 = vector.load %arg3[%c0_5, %c0_6] : memref<16x128xbf16, #tpu.memory_space<vmem>>, vector<16x128xbf16>
    tpu.vector_store %arg3[%c0_5, %c0_6], %15 {strides = array<i32>} : memref<16x128xbf16, #tpu.memory_space<vmem>>, vector<16x128xbf16>,
    return
  }
  func.func @transform_0(%arg0: i32) -> (i32, i32) {
    %c0_i32 = arith.constant 0 : i32
    %c0_i32_0 = arith.constant 0 : i32
    return %arg0, %c0_i32 : i32, i32
  }
  func.func @transform_1(%arg0: i32) -> (i32, i32) {
    %c0_i32 = arith.constant 0 : i32
    %c0_i32_0 = arith.constant 0 : i32
    %c0_i32_1 = arith.constant 0 : i32
    return %c0_i32, %c0_i32_0 : i32, i32
  }
  func.func @transform_2(%arg0: i32) -> (i32, i32) {
    %c0_i32 = arith.constant 0 : i32
    %c0_i32_0 = arith.constant 0 : i32
    return %arg0, %c0_i32 : i32, i32
  }
}

</mosaic_0001>

<llo_original>
// kernel: tpu_custom_call.1
$region0: #{tpu_custom_call.1}
  #allocation0 [shape = 'u32[]', space=smem, size = 0x4, offset = 0x4, fixed_abs, tag = 'smem constant byte address 0x4 - core index']
  #allocation1 [shape = 'u32[144,128]{1,0:T(1,128)}', space=vmem, size = 0x12000, scoped, tag = 'internal scratch']
  %s0 = inlined_call_operand.hbm [shape: bf16[16,128], index: 0, kind: input, shape index: {}]
  %s1 = inlined_call_operand.vmem [shape: f32[1,128], index: 1, kind: input, shape index: {}]
  %s2 = inlined_call_operand.hbm [shape: bf16[16,128], index: 2, kind: output, shape index: {}]
  %s3 = sld [smem:[#allocation0]]
  $region22: #{tpu_custom_call.1} parent=0
    _
  %s5 = ssub.s32 1, %s3
  %s6 = scalar_select 0, %s5, %s3
  $region1: #{tpu_custom_call.1} parent=0
    #allocation2 [shape = 'u8[4096]{0}', space=vmem, size = 0x1000, scoped, tag = 'input window, operand 0, single buffered']
    #allocation3 [shape = 's32[1]{0}', space=sflag, size = 0x4, scoped, tag = 'scoped memory for tpu_custom_call.1']
    #allocation4 [shape = 's32[1]{0}', space=sflag, size = 0x4, scoped, tag = 'scoped memory for tpu_custom_call.1']
    #allocation5 [shape = 'u8[4096]{0}', space=vmem, size = 0x1000, scoped, tag = 'output window, operand 0, single buffered']
    %7 = vsyncpa [#allocation3], 0
    %8 = vsyncpa [#allocation4], 0
    // Predicated region
    $region2: #{tpu_custom_call.1} parent=1 // pred_check
      _
    $region3: #{tpu_custom_call.1} parent=1 // pred_check_branch
      %10 = sbr.rel (0) target = $region5
    $region4: #{tpu_custom_call.1} parent=1 // pred_region
      %s12 = ssub.s32 128, 128
      %13 = vsyncadd [#allocation3], %s12
      %s14 = sshll.u32 [#allocation2], 4
      %s15 = int_to_ptr.vmem [resolvable:$true] %s14
      %20 = dma.hbm_to_vmem [thread:$0]  %s0, 128, %s15, [#allocation3], 64, 64, 4
    $region5: #{tpu_custom_call.1} parent=1 // pred_fallthru
      _
    // Predicated region
    $region6: #{tpu_custom_call.1} parent=1 // pred_check
      _
    $region7: #{tpu_custom_call.1} parent=1 // pred_check_branch
      %22 = sbr.rel (0) target = $region9
    $region8: #{tpu_custom_call.1} parent=1 // pred_region
      _
    $region9: #{tpu_custom_call.1} parent=1 // pred_fallthru
      _
    // Predicated region
    $region10: #{tpu_custom_call.1} parent=1 // pred_check
      _
    $region11: #{tpu_custom_call.1} parent=1 // pred_check_branch
      %24 = sbr.rel (0) target = $region13
    $region12: #{tpu_custom_call.1} parent=1 // pred_region
      %25 = dma.done [#allocation3], 128
    $region13: #{tpu_custom_call.1} parent=1 // pred_fallthru
      _
    %v26 = vld [vmem:[#allocation2] sm:$0xf]
    %v27 = vld [vmem:[#allocation2 + $0x4] sm:$0xf]
    %v28 = vunpack.c.l.bf16 %v26
    %v29 = vunpack.c.l.bf16 %v27
    %v30 = vmul.f32 %v28, %v28
    %v31 = vmul.f32 %v29, %v29
    %32 = vadd.xlane.f32.xlu0 %v30
    %v33 = vpop.xlane.xlu0 %32
    %34 = vadd.xlane.f32.xlu0 %v31
    %v35 = vpop.xlane.xlu0 %34
    %v36 = vrcp.pop 32.0
    %v37 = vmul.f32 %v33, %v36
    %v38 = vmul.f32 %v35, %v36
    %v39 = vadd.f32 %v37, 1e-05
    %v40 = vadd.f32 %v38, 1e-05
    %v41 = vrsqrt.pop %v39
    %v42 = vrsqrt.pop %v40
    %v43 = vld [vmem:[%s1] sm:$0x1]
    %v44 = vmul.f32 %v28, %v41
    %v45 = vmul.f32 %v29, %v42
    %v47 = vlaneseq
    %v48 = vshrl.u32 %v47, 7
    %v49 = vsub.s32 0, %v48
    %v50 = vrot.slane %v43, %v49
    %v52 = vmul.f32 %v50, %v44
    %v53 = vmul.f32 %v50, %v45
    %v54 = vpack.c.bf16 %v53, %v52
    %v56 = vunpack.c.l.b16 %v54
    %v57 = vunpack.c.h.b16 %v54
    %v58 = vpack.c.b16 %v56, %v56
    %v59 = vpack.c.b16 %v57, %v57
    %62 = vst [vmem:[#allocation5] sm:$0xf] %v58
    %63 = vst [vmem:[#allocation5 + $0x4] sm:$0xf] %v59
    // Predicated region
    $region14: #{tpu_custom_call.1} parent=1 // pred_check
      _
    $region15: #{tpu_custom_call.1} parent=1 // pred_check_branch
      %65 = sbr.rel (0) target = $region17
    $region16: #{tpu_custom_call.1} parent=1 // pred_region
      %s67 = ssub.s32 128, 128
      %68 = vsyncadd [#allocation4], %s67
      %s69 = sshll.u32 [#allocation5], 4
      %s70 = int_to_ptr.vmem [resolvable:$true] %s69
      %75 = dma.vmem_to_hbm [thread:$0]  %s70, 128, %s2, [#allocation4], 64, 64, 4
    $region17: #{tpu_custom_call.1} parent=1 // pred_fallthru
      _
    // Predicated region
    $region18: #{tpu_custom_call.1} parent=1 // pred_check
      _
    $region19: #{tpu_custom_call.1} parent=1 // pred_check_branch
      %77 = sbr.rel (0) target = $region21
    $region20: #{tpu_custom_call.1} parent=1 // pred_region
      %78 = dma.done [#allocation4], 128
    $region21: #{tpu_custom_call.1} parent=1 // pred_fallthru
      _
    %79 = vsyncpa [#allocation3], 1
    %80 = vsyncpa [#allocation4], 1

</llo_original>
